<compile_context>
chip_gen: v5e
topology: v5e:2x2
jax: 0.10.0
libtpu: 0.0.40
codegen_flags: <defaults>
</compile_context>

<pallas_src>
import jax
import jax.numpy as jnp
from jax.experimental import pallas as pl
from jax.experimental.pallas import tpu as pltpu

_NEG = -1e30                                 # fill for padded vocab lanes
_RESIDENT_TABLE_BYTES = 12 * 1024 * 1024     # VMEM residency gate (safe on v5e/v6e/v7x)


def _round_up(x, m):
    return ((x + m - 1) // m) * m


# ---------------------------------------------------------------------------
# Resident-table path: one-hot MXU gather over R-row tiles.
# ---------------------------------------------------------------------------

def _resident_logits_kernel(ids_ref, tab_ref, logits_ref):
    r = ids_ref.shape[0]
    v_pad = tab_ref.shape[1]
    ids = ids_ref[...]                                            # (R, 1) int32
    col = jax.lax.broadcasted_iota(jnp.int32, (r, v_pad), 1)      # one iota / block
    one_hot = (col == ids).astype(jnp.float32)                    # (R, v_pad)
    logits_ref[...] = jnp.dot(one_hot, tab_ref[...],
                              preferred_element_type=jnp.float32,
                              precision=jax.lax.Precision.HIGHEST)


def _resident_loss_kernel(ids_ref, tgt_ref, tab_ref, logits_ref, lsum_ref, lcnt_ref):
    r = ids_ref.shape[0]
    v_pad = tab_ref.shape[1]
    ids = ids_ref[...]                                            # (R, 1) int32
    col = jax.lax.broadcasted_iota(jnp.int32, (r, v_pad), 1)      # shared by gather & target select
    one_hot = (col == ids).astype(jnp.float32)                    # (R, v_pad)
    # Exact embedding rows via HIGHEST-precision MXU matmul.
    logits = jnp.dot(one_hot, tab_ref[...],
                     preferred_element_type=jnp.float32,
                     precision=jax.lax.Precision.HIGHEST)         # (R, v_pad)
    logits_ref[...] = logits

    # Numerically stable logsumexp (padded lanes are -1e30 -> exp underflows to 0).
    m = jnp.max(logits, axis=-1, keepdims=True)                   # (R, 1)
    lse = jnp.log(jnp.sum(jnp.exp(logits - m), axis=-1, keepdims=True)) + m

    tgt = tgt_ref[...]                                            # (R, 1) int32
    tgt_logit = jnp.sum(jnp.where(col == tgt, logits, 0.0),
                        axis=-1, keepdims=True)                   # (R, 1)
    valid = (tgt >= 0).astype(jnp.float32)                        # ignore_index: tgt < 0
    per_row = valid * (lse - tgt_logit)                           # (R, 1)

    # Per-block partial sum / count -> grid axis stays fully parallel.
    lsum_ref[...] = jnp.sum(per_row, axis=0, keepdims=True).reshape(1, 1, 1)
    lcnt_ref[...] = jnp.sum(valid, axis=0, keepdims=True).reshape(1, 1, 1)


def _forward_resident(idx_flat, tgt_flat, table, v_pad, row_tile):
    V = table.shape[0]
    N = idx_flat.shape[0]

    R = max(8, _round_up(min(int(row_tile), _round_up(N, 8)), 8))
    num_blocks = pl.cdiv(N, R)
    n_pad = num_blocks * R

    # Padded f32 table (pad rows are never selected; pad columns are -1e30 so
    # they never affect max / logsumexp and every logits store is lane-dense).
    tab = jnp.pad(table.astype(jnp.float32),
                  ((0, v_pad - V), (0, v_pad - V)))
    tab = tab.at[:, V:].set(_NEG)

    ids = jnp.pad(idx_flat, (0, n_pad - N)).reshape(n_pad, 1)

    ids_spec = pl.BlockSpec((R, 1), lambda i: (i, 0))
    tab_spec = pl.BlockSpec((v_pad, v_pad), lambda i: (0, 0))      # constant -> resident
    logits_spec = pl.BlockSpec((R, v_pad), lambda i: (i, 0))
    logits_shape = jax.ShapeDtypeStruct((n_pad, v_pad), jnp.float32)

    if tgt_flat is None:
        logits = pl.pallas_call(
            _resident_logits_kernel,
            out_shape=logits_shape,
            grid=(num_blocks,),
            in_specs=[ids_spec, tab_spec],
            out_specs=logits_spec,
            compiler_params=pltpu.CompilerParams(
                dimension_semantics=("parallel",)),
        )(ids, tab)
        return logits[:N, :V], None

    tgt = jnp.pad(tgt_flat, (0, n_pad - N), constant_values=-1).reshape(n_pad, 1)
    tgt_spec = pl.BlockSpec((R, 1), lambda i: (i, 0))
    part_spec = pl.BlockSpec((1, 1, 1), lambda i: (i, 0, 0))

    logits, psum, pcnt = pl.pallas_call(
        _resident_loss_kernel,
        out_shape=(logits_shape,
                   jax.ShapeDtypeStruct((num_blocks, 1, 1), jnp.float32),
                   jax.ShapeDtypeStruct((num_blocks, 1, 1), jnp.float32)),
        grid=(num_blocks,),
        in_specs=[ids_spec, tgt_spec, tab_spec],
        out_specs=(logits_spec, part_spec, part_spec),
        compiler_params=pltpu.CompilerParams(
            dimension_semantics=("parallel",)),      # no cross-step state -> both TCs on v7x
    )(ids, tgt, tab)

    # NaN if every target is ignored, matching F.cross_entropy's empty reduction.
    loss = jnp.sum(psum) / jnp.sum(pcnt)
    return logits[:N, :V], loss


# ---------------------------------------------------------------------------
# Large-vocab fallback: per-row DMA gather (table stays in HBM).
# ---------------------------------------------------------------------------

def _gather_logits_kernel(idx_sref, row_ref, logits_ref):
    logits_ref[...] = row_ref[...]


def _gather_loss_kernel(idx_sref, tgt_sref, row_ref, logits_ref, loss_ref,
                        acc_ref, cnt_ref):
    i = pl.program_id(0)

    @pl.when(i == 0)
    def _init():
        acc_ref[...] = jnp.zeros_like(acc_ref)
        cnt_ref[...] = jnp.zeros_like(cnt_ref)

    logits_ref[...] = row_ref[...]
    row = row_ref[0]                                              # (1, V)
    m = jnp.max(row, axis=-1, keepdims=True)
    lse = jnp.log(jnp.sum(jnp.exp(row - m), axis=-1, keepdims=True)) + m

    v = row.shape[-1]
    tgt = tgt_sref[i]
    col = jax.lax.broadcasted_iota(jnp.int32, (1, v), 1)
    tgt_logit = jnp.sum(jnp.where(col == tgt, row, 0.0), axis=-1, keepdims=True)
    valid = (jnp.full((1, 1), tgt, dtype=jnp.int32) >= 0).astype(jnp.float32)

    acc_ref[...] = acc_ref[...] + valid * (lse - tgt_logit)
    cnt_ref[...] = cnt_ref[...] + valid

    @pl.when(i == pl.num_programs(0) - 1)
    def _finalize():
        loss_ref[...] = acc_ref[...] / cnt_ref[...]   # NaN if no valid targets


def _forward_gather(idx_flat, tgt_flat, table):
    # TODO(synk): batch R rows per grid step with manual make_async_copy row
    # gathers into a double-buffered VMEM staging buffer; kept as a simple
    # per-row BlockSpec gather for the rare table-exceeds-VMEM case.
    V = table.shape[0]
    N = idx_flat.shape[0]
    tab3 = table.astype(jnp.float32).reshape(V, 1, V)   # no padded HBM copy
    row_block = (1, 1, V)
    logits_shape = jax.ShapeDtypeStruct((N, 1, V), jnp.float32)

    if tgt_flat is None:
        logits = pl.pallas_call(
            _gather_logits_kernel,
            out_shape=logits_shape,
            grid_spec=pltpu.PrefetchScalarGridSpec(
                num_scalar_prefetch=1,
                grid=(N,),
                in_specs=[pl.BlockSpec(row_block,
                                       lambda i, idx_ref: (idx_ref[i], 0, 0))],
                out_specs=pl.BlockSpec(row_block, lambda i, idx_ref: (i, 0, 0)),
            ),
            compiler_params=pltpu.CompilerParams(
                dimension_semantics=("parallel",)),
        )(idx_flat, tab3)
        return logits[:, 0, :], None

    logits, loss = pl.pallas_call(
        _gather_loss_kernel,
        out_shape=(logits_shape, jax.ShapeDtypeStruct((1, 1), jnp.float32)),
        grid_spec=pltpu.PrefetchScalarGridSpec(
            num_scalar_prefetch=2,
            grid=(N,),
            in_specs=[pl.BlockSpec(row_block,
                                   lambda i, idx_ref, tgt_ref: (idx_ref[i], 0, 0))],
            out_specs=(pl.BlockSpec(row_block, lambda i, idx_ref, tgt_ref: (i, 0, 0)),
                       pl.BlockSpec((1, 1), lambda i, idx_ref, tgt_ref: (0, 0))),
            scratch_shapes=[pltpu.VMEM((1, 1), jnp.float32),
                            pltpu.VMEM((1, 1), jnp.float32)],
        ),
        compiler_params=pltpu.CompilerParams(
            dimension_semantics=("arbitrary",)),
    )(idx_flat, tgt_flat, tab3)
    return logits[:, 0, :], loss[0, 0]


# ---------------------------------------------------------------------------
# Public forward pass.
# ---------------------------------------------------------------------------

def bigram_forward(idx, table, targets=None, row_tile=256):
    """Forward pass of the bigram LM.

    idx:     (B, T) integer token ids
    table:   (V, V) float32 embedding table (row = token id)
    targets: optional (B, T) integer token ids (negative => ignored)

    Returns (logits, loss).  Matching PyTorch, logits are (B, T, V) when
    targets is None and (B*T, V) otherwise; loss is a scalar or None.
    """
    B, T = idx.shape
    V = table.shape[0]
    N = B * T
    v_pad = _round_up(V, 128)

    # Safety net: PyTorch raises on out-of-range ids/targets; here we clamp so
    # the gather / target select can never touch a padded lane.  Negative
    # targets mean ignore_index (PyTorch's -100).
    idx_flat = jnp.clip(idx.reshape(N).astype(jnp.int32), 0, V - 1)
    tgt_flat = None
    if targets is not None:
        t = targets.reshape(N).astype(jnp.int32)
        tgt_flat = jnp.where(t >= 0, jnp.clip(t, 0, V - 1), t)

    if V * v_pad * 4 <= _RESIDENT_TABLE_BYTES:
        logits, loss = _forward_resident(idx_flat, tgt_flat, table, v_pad, row_tile)
    else:
        logits, loss = _forward_gather(idx_flat, tgt_flat, table)

    if targets is None:
        return logits.reshape(B, T, V), None
    return logits.reshape(N, V), loss


if __name__ == "__main__":
    key = jax.random.PRNGKey(0)
    k_tab, k_idx, k_tgt = jax.random.split(key, 3)

    VOCAB = 65    # classic char-level vocab; exercises the lane-padding path
    B, T = 2, 8   # batch, sequence

    # nn.Embedding default init ~ N(0, 1)
    table = jax.random.normal(k_tab, (VOCAB, VOCAB), dtype=jnp.float32)
    idx = jax.random.randint(k_idx, (B, T), 0, VOCAB, dtype=jnp.int32)
    targets = jax.random.randint(k_tgt, (B, T), 0, VOCAB, dtype=jnp.int32)

    # Pure-JAX reference.
    ref_logits = table[idx]                                   # (B, T, V)
    ref_flat = ref_logits.reshape(B * T, VOCAB)
    ref_lse = jax.nn.logsumexp(ref_flat, axis=-1)
    ref_tgt = jnp.take_along_axis(ref_flat, targets.reshape(-1, 1), axis=1)[:, 0]
    ref_loss = jnp.mean(ref_lse - ref_tgt)

    # Loss path (PyTorch returns flattened (B*T, C) logits in this branch).
    logits, loss = bigram_forward(idx, table, targets)
    jax.block_until_ready((logits, loss))
    assert logits.shape == (B * T, VOCAB)
    assert jnp.allclose(logits, ref_flat, atol=1e-4)
    assert jnp.allclose(loss, ref_loss, atol=1e-4), (loss, ref_loss)

    # Logits-only path.
    logits_only, none_loss = bigram_forward(idx, table, None)
    jax.block_until_ready(logits_only)
    assert none_loss is None
    assert logits_only.shape == (B, T, VOCAB)
    assert jnp.allclose(logits_only, ref_logits, atol=1e-4)

    # Multi-block row tiling (2 blocks of 8 rows) hits the partial-sum reduction.
    logits_mb, loss_mb = bigram_forward(idx, table, targets, row_tile=8)
    jax.block_until_ready((logits_mb, loss_mb))
    assert jnp.allclose(logits_mb, ref_flat, atol=1e-4)
    assert jnp.allclose(loss_mb, ref_loss, atol=1e-4), (loss_mb, ref_loss)

    # Odd N exercises row padding (padded rows carry ignored targets).
    B2, T2 = 3, 5
    idx2 = jax.random.randint(k_idx, (B2, T2), 0, VOCAB, dtype=jnp.int32)
    targets2 = jax.random.randint(k_tgt, (B2, T2), 0, VOCAB, dtype=jnp.int32)
    ref2 = table[idx2].reshape(B2 * T2, VOCAB)
    ref_loss2 = jnp.mean(jax.nn.logsumexp(ref2, axis=-1)
                         - jnp.take_along_axis(ref2, targets2.reshape(-1, 1), axis=1)[:, 0])
    logits2, loss2 = bigram_forward(idx2, table, targets2)
    jax.block_until_ready((logits2, loss2))
    assert jnp.allclose(logits2, ref2, atol=1e-4)
    assert jnp.allclose(loss2, ref_loss2, atol=1e-4), (loss2, ref_loss2)

    print("KERNEL_OK")
</pallas_src>

<mosaic_0001>
module attributes {stable_mosaic.version = 11 : i64} {
  func.func @_resident_loss_kernel(%arg0: i32, %arg1: memref<16x1xi32, #tpu.memory_space<vmem>>, %arg2: memref<16x1xi32, #tpu.memory_space<vmem>>, %arg3: memref<128x128xf32, #tpu.memory_space<vmem>>, %arg4: memref<16x128xf32, #tpu.memory_space<vmem>>, %arg5: memref<1x1x1xf32, #tpu.memory_space<vmem>>, %arg6: memref<1x1x1xf32, #tpu.memory_space<vmem>>) attributes {dimension_semantics = [#tpu.dimension_semantics<parallel>], iteration_bounds = array<i64: 1>, scalar_prefetch = 0 : i64, scratch_operands = 0 : i64, tpu.core_type = #tpu.core_type<tc>, window_params = [{transform_indices = @transform_0, window_bounds = array<i64: 16, 1>}, {transform_indices = @transform_1, window_bounds = array<i64: 16, 1>}, {pipeline_mode = #tpu.pipeline_mode<synchronous>, transform_indices = @transform_2, window_bounds = array<i64: 128, 128>}, {transform_indices = @transform_3, window_bounds = array<i64: 16, 128>}, {transform_indices = @transform_4, window_bounds = array<i64: 1, 1, 1>}, {transform_indices = @transform_5, window_bounds = array<i64: 1, 1, 1>}]} {
    %c0 = arith.constant 0 : index
    %c0_0 = arith.constant 0 : index
    %0 = vector.load %arg1[%c0, %c0_0] : memref<16x1xi32, #tpu.memory_space<vmem>>, vector<16x1xi32>
    %1 = tpu.iota {dimensions = array<i32: 1>} : vector<16x128xi32>
    %2 = vector.broadcast %0 : vector<16x1xi32> to vector<16x128xi32>
    %3 = arith.cmpi eq, %1, %2 : vector<16x128xi32>
    %4 = arith.extui %3 : vector<16x128xi1> to vector<16x128xi32>
    %5 = arith.sitofp %4 : vector<16x128xi32> to vector<16x128xf32>
    %c0_1 = arith.constant 0 : index
    %c0_2 = arith.constant 0 : index
    %6 = vector.load %arg3[%c0_1, %c0_2] : memref<128x128xf32, #tpu.memory_space<vmem>>, vector<128x128xf32>
    %cst = arith.constant dense<0.000000e+00> : vector<16x128xf32>
    %7 = tpu.matmul %5, %6, %cst {dimension_numbers = #tpu.dot_dimension_numbers<[1], [0], [0], [1], [0, 0, 1, 1], [], []>, precision = #tpu.contract_precision<fp32>} : vector<16x128xf32>, vector<128x128xf32>, vector<16x128xf32> -> vector<16x128xf32>
    %c0_3 = arith.constant 0 : index
    %c0_4 = arith.constant 0 : index
    %8 = vector.load %arg4[%c0_3, %c0_4] : memref<16x128xf32, #tpu.memory_space<vmem>>, vector<16x128xf32>
    tpu.vector_store %arg4[%c0_3, %c0_4], %7 {strides = array<i32>} : memref<16x128xf32, #tpu.memory_space<vmem>>, vector<16x128xf32>,
    %cst_5 = arith.constant dense<0xFF800000> : vector<16xf32>
    %9 = vector.multi_reduction <maximumf>, %7, %cst_5 [1] : vector<16x128xf32> to vector<16xf32>
    %10 = vector.shape_cast %9 : vector<16xf32> to vector<16x1xf32>
    %11 = vector.broadcast %10 : vector<16x1xf32> to vector<16x128xf32>
    %12 = arith.subf %7, %11 : vector<16x128xf32>
    %13 = math.exp %12 : vector<16x128xf32>
    %cst_6 = arith.constant dense<0.000000e+00> : vector<16xf32>
    %14 = vector.multi_reduction <add>, %13, %cst_6 [1] : vector<16x128xf32> to vector<16xf32>
    %15 = vector.shape_cast %14 : vector<16xf32> to vector<16x1xf32>
    %16 = math.log %15 : vector<16x1xf32>
    %17 = arith.addf %16, %10 : vector<16x1xf32>
    %c0_7 = arith.constant 0 : index
    %c0_8 = arith.constant 0 : index
    %18 = vector.load %arg2[%c0_7, %c0_8] : memref<16x1xi32, #tpu.memory_space<vmem>>, vector<16x1xi32>
    %19 = vector.broadcast %18 : vector<16x1xi32> to vector<16x128xi32>
    %20 = arith.cmpi eq, %1, %19 : vector<16x128xi32>
    %cst_9 = arith.constant 0.000000e+00 : f32
    %21 = vector.broadcast %cst_9 : f32 to vector<16x128xf32>
    %22 = arith.select %20, %7, %21 : vector<16x128xi1>, vector<16x128xf32>
    %cst_10 = arith.constant dense<0.000000e+00> : vector<16xf32>
    %23 = vector.multi_reduction <add>, %22, %cst_10 [1] : vector<16x128xf32> to vector<16xf32>
    %24 = vector.shape_cast %23 : vector<16xf32> to vector<16x1xf32>
    %c0_i32 = arith.constant 0 : i32
    %25 = vector.broadcast %c0_i32 : i32 to vector<16x1xi32>
    %26 = arith.cmpi sge, %18, %25 : vector<16x1xi32>
    %27 = arith.extui %26 : vector<16x1xi1> to vector<16x1xi32>
    %28 = arith.sitofp %27 : vector<16x1xi32> to vector<16x1xf32>
    %29 = arith.subf %17, %24 : vector<16x1xf32>
    %30 = arith.mulf %28, %29 : vector<16x1xf32>
    %cst_11 = arith.constant dense<0.000000e+00> : vector<1xf32>
    %31 = vector.multi_reduction <add>, %30, %cst_11 [0] : vector<16x1xf32> to vector<1xf32>
    %32 = vector.shape_cast %31 : vector<1xf32> to vector<1x1xf32>
    %33 = vector.shape_cast %32 : vector<1x1xf32> to vector<1x1x1xf32>
    %c0_12 = arith.constant 0 : index
    %c0_13 = arith.constant 0 : index
    %c0_14 = arith.constant 0 : index
    %34 = vector.load %arg5[%c0_12, %c0_13, %c0_14] : memref<1x1x1xf32, #tpu.memory_space<vmem>>, vector<1x1x1xf32>
    tpu.vector_store %arg5[%c0_12, %c0_13, %c0_14], %33 {strides = array<i32>} : memref<1x1x1xf32, #tpu.memory_space<vmem>>, vector<1x1x1xf32>,
    %cst_15 = arith.constant dense<0.000000e+00> : vector<1xf32>
    %35 = vector.multi_reduction <add>, %28, %cst_15 [0] : vector<16x1xf32> to vector<1xf32>
    %36 = vector.shape_cast %35 : vector<1xf32> to vector<1x1xf32>
    %37 = vector.shape_cast %36 : vector<1x1xf32> to vector<1x1x1xf32>
    %c0_16 = arith.constant 0 : index
    %c0_17 = arith.constant 0 : index
    %c0_18 = arith.constant 0 : index
    %38 = vector.load %arg6[%c0_16, %c0_17, %c0_18] : memref<1x1x1xf32, #tpu.memory_space<vmem>>, vector<1x1x1xf32>
    tpu.vector_store %arg6[%c0_16, %c0_17, %c0_18], %37 {strides = array<i32>} : memref<1x1x1xf32, #tpu.memory_space<vmem>>, vector<1x1x1xf32>,
    return
  }
  func.func @transform_0(%arg0: i32) -> (i32, i32) {
    %c0_i32 = arith.constant 0 : i32
    %c0_i32_0 = arith.constant 0 : i32
    return %arg0, %c0_i32 : i32, i32
  }
  func.func @transform_1(%arg0: i32) -> (i32, i32) {
    %c0_i32 = arith.constant 0 : i32
    %c0_i32_0 = arith.constant 0 : i32
    return %arg0, %c0_i32 : i32, i32
  }
  func.func @transform_2(%arg0: i32) -> (i32, i32) {
    %c0_i32 = arith.constant 0 : i32
    %c0_i32_0 = arith.constant 0 : i32
    %c0_i32_1 = arith.constant 0 : i32
    return %c0_i32, %c0_i32_0 : i32, i32
  }
  func.func @transform_3(%arg0: i32) -> (i32, i32) {
    %c0_i32 = arith.constant 0 : i32
    %c0_i32_0 = arith.constant 0 : i32
    return %arg0, %c0_i32 : i32, i32
  }
  func.func @transform_4(%arg0: i32) -> (i32, i32, i32) {
    %c0_i32 = arith.constant 0 : i32
    %c0_i32_0 = arith.constant 0 : i32
    %c0_i32_1 = arith.constant 0 : i32
    return %arg0, %c0_i32, %c0_i32_0 : i32, i32, i32
  }
  func.func @transform_5(%arg0: i32) -> (i32, i32, i32) {
    %c0_i32 = arith.constant 0 : i32
    %c0_i32_0 = arith.constant 0 : i32
    %c0_i32_1 = arith.constant 0 : i32
    return %arg0, %c0_i32, %c0_i32_0 : i32, i32, i32
  }
}

</mosaic_0001>

<llo_original>
// kernel: tpu_custom_call.1
$region0: #{tpu_custom_call.1}
  #allocation0 [shape = 'u32[]', space=smem, size = 0x4, offset = 0x4, fixed_abs, tag = 'smem constant byte address 0x4 - core index']
  #allocation1 [shape = 'u32[72,128]{1,0:T(1,128)}', space=vmem, size = 0x9000, scoped, tag = 'internal scratch']
  %s0 = inlined_call_operand.vmem [shape: s32[16,1], index: 0, kind: input, shape index: {}]
  %s1 = inlined_call_operand.vmem [shape: s32[16,1], index: 1, kind: input, shape index: {}]
  %s2 = inlined_call_operand.hbm [shape: f32[128,128], index: 2, kind: input, shape index: {}]
  %s3 = inlined_call_operand.hbm [shape: f32[16,128], index: 3, kind: output, shape index: {0}]
  %s4 = inlined_call_operand.hbm [shape: f32[1,1,1], index: 4, kind: output, shape index: {1}]
  %s5 = inlined_call_operand.hbm [shape: f32[1,1,1], index: 5, kind: output, shape index: {2}]
  %6 = xla_tuple %s3, %s4, %s5
  %s7 = sld [smem:[#allocation0]]
  $region42: #{tpu_custom_call.1} parent=0
    _
  %s9 = ssub.s32 1, %s7
  %s10 = scalar_select 0, %s9, %s7
  $region1: #{tpu_custom_call.1} parent=0
    #allocation2 [shape = 'u8[65536]{0}', space=vmem, size = 0x10000, scoped, tag = 'input window, operand 2, single buffered']
    #allocation3 [shape = 's32[1]{0}', space=sflag, size = 0x4, scoped, tag = 'scoped memory for tpu_custom_call.1']
    #allocation4 [shape = 's32[1]{0}', space=sflag, size = 0x4, scoped, tag = 'scoped memory for tpu_custom_call.1']
    #allocation5 [shape = 'u8[8192]{0}', space=vmem, size = 0x2000, scoped, tag = 'output window, operand 0, single buffered']
    #allocation6 [shape = 'u8[512]{0}', space=vmem, size = 0x400, scoped, tag = 'output window, operand 1, single buffered']
    #allocation7 [shape = 's32[1]{0}', space=sflag, size = 0x4, scoped, tag = 'scoped memory for tpu_custom_call.1']
    #allocation8 [shape = 'u8[512]{0}', space=vmem, size = 0x400, scoped, tag = 'output window, operand 2, single buffered']
    %11 = vsyncpa [#allocation3], 0
    %12 = vsyncpa [#allocation4], 0
    %13 = vsyncpa [#allocation7], 0
    // Predicated region
    $region2: #{tpu_custom_call.1} parent=1 // pred_check
      _
    $region3: #{tpu_custom_call.1} parent=1 // pred_check_branch
      %15 = sbr.rel (0) target = $region5
    $region4: #{tpu_custom_call.1} parent=1 // pred_region
      _
    $region5: #{tpu_custom_call.1} parent=1 // pred_fallthru
      _
    // Predicated region
    $region6: #{tpu_custom_call.1} parent=1 // pred_check
      _
    $region7: #{tpu_custom_call.1} parent=1 // pred_check_branch
      %17 = sbr.rel (0) target = $region9
    $region8: #{tpu_custom_call.1} parent=1 // pred_region
      _
    $region9: #{tpu_custom_call.1} parent=1 // pred_fallthru
      _
    // Predicated region
    $region10: #{tpu_custom_call.1} parent=1 // pred_check
      _
    $region11: #{tpu_custom_call.1} parent=1 // pred_check_branch
      %19 = sbr.rel (0) target = $region13
    $region12: #{tpu_custom_call.1} parent=1 // pred_region
      %21 = vsyncadd [#allocation3], 0
      %s22 = sshll.u32 %s2, 4
      %s23 = int_to_ptr.hbm [resolvable:$true] %s22
      %s24 = sshll.u32 [#allocation2], 4
      %s25 = int_to_ptr.vmem [resolvable:$true] %s24
      %30 = dma.hbm_to_vmem [thread:$0]  %s23, 2048, %s25, [#allocation3], 128, 128, 8
    $region13: #{tpu_custom_call.1} parent=1 // pred_fallthru
      _
    // Predicated region
    $region14: #{tpu_custom_call.1} parent=1 // pred_check
      _
    $region15: #{tpu_custom_call.1} parent=1 // pred_check_branch
      %32 = sbr.rel (0) target = $region17
    $region16: #{tpu_custom_call.1} parent=1 // pred_region
      %34 = dma.done [#allocation3], 2048
    $region17: #{tpu_custom_call.1} parent=1 // pred_fallthru
      _
    %v35 = vld [vmem:[%s0] sm:$0xff]
    %v36 = vld [vmem:[%s0 + $0x8] sm:$0xff]
    %v37 = vlaneseq
    %v38 = vand.u32 %v37, 127
    %39 = vset.pattern.permute.xlu0 0
    %40 = vperm.xlu0 %39, %v35
    %v41 = vpop.permute.xlu0 %40
    %42 = vset.pattern.permute.xlu0 0
    %43 = vperm.xlu0 %42, %v36
    %v44 = vpop.permute.xlu0 %43
    %vm45 = vcmp.eq.s32.totalorder %v38, %v41
    %vm46 = vcmp.eq.s32.totalorder %v38, %v44
    %v47 = vsel %vm45, 1, 0
    %v48 = vsel %vm46, 1, 0
    %v49 = vcvt.s32.f32 %v47
    %v50 = vcvt.s32.f32 %v48
    %v51 = vld [vmem:[#allocation2] sm:$0xff]
    %v52 = vld [vmem:[#allocation2 + $0x8] sm:$0xff]
    %v53 = vld [vmem:[#allocation2 + $0x10] sm:$0xff]
    %v54 = vld [vmem:[#allocation2 + $0x18] sm:$0xff]
    %v55 = vld [vmem:[#allocation2 + $0x20] sm:$0xff]
    %v56 = vld [vmem:[#allocation2 + $0x28] sm:$0xff]
    %v57 = vld [vmem:[#allocation2 + $0x30] sm:$0xff]
    %v58 = vld [vmem:[#allocation2 + $0x38] sm:$0xff]
    %v59 = vld [vmem:[#allocation2 + $0x40] sm:$0xff]
    %v60 = vld [vmem:[#allocation2 + $0x48] sm:$0xff]
    %v61 = vld [vmem:[#allocation2 + $0x50] sm:$0xff]
    %v62 = vld [vmem:[#allocation2 + $0x58] sm:$0xff]
    %v63 = vld [vmem:[#allocation2 + $0x60] sm:$0xff]
    %v64 = vld [vmem:[#allocation2 + $0x68] sm:$0xff]
    %v65 = vld [vmem:[#allocation2 + $0x70] sm:$0xff]
    %v66 = vld [vmem:[#allocation2 + $0x78] sm:$0xff]
    %v67 = vand.u32 %v66, 4294901760
    %68 = vmatpush.msra.mxu0 %v67
    %v69 = vand.u32 %v65, 4294901760
    %70 = vmatpush.msra.mxu0 %v69
    %v71 = vand.u32 %v64, 4294901760
    %72 = vmatpush.msra.mxu0 %v71
    %v73 = vand.u32 %v63, 4294901760
    %74 = vmatpush.msra.mxu0 %v73
    %v75 = vand.u32 %v62, 4294901760
    %76 = vmatpush.msra.mxu0 %v75
    %v77 = vand.u32 %v61, 4294901760
    %78 = vmatpush.msra.mxu0 %v77
    %v79 = vand.u32 %v60, 4294901760
    %80 = vmatpush.msra.mxu0 %v79
    %v81 = vand.u32 %v59, 4294901760
    %82 = vmatpush.msra.mxu0 %v81
    %v83 = vand.u32 %v58, 4294901760
    %84 = vmatpush.msra.mxu0 %v83
    %v85 = vand.u32 %v57, 4294901760
    %86 = vmatpush.msra.mxu0 %v85
    %v87 = vand.u32 %v56, 4294901760
    %88 = vmatpush.msra.mxu0 %v87
    %v89 = vand.u32 %v55, 4294901760
    %90 = vmatpush.msra.mxu0 %v89
    %v91 = vand.u32 %v54, 4294901760
    %92 = vmatpush.msra.mxu0 %v91
    %v93 = vand.u32 %v53, 4294901760
    %94 = vmatpush.msra.mxu0 %v93
    %v95 = vand.u32 %v52, 4294901760
    %96 = vmatpush.msra.mxu0 %v95
    %v97 = vand.u32 %v51, 4294901760
    %98 = vmatpush.msra.mxu0 %v97
    %v99 = vand.u32 %v49, 4294901760
    %v100 = vsub.f32 %v49, %v99
    %v101 = vand.u32 %v100, 4294901760
    %v102 = vsub.f32 %v100, %v101
    %v103 = vand.u32 %v102, 4294901760
    %104 = vmatmul.f32.gmra.mxu0 %v103
    %v105 = vpop.f32.mrf.mxu0
    %v106 = vadd.f32 0.0, %v105
    %v107 = vand.u32 %v50, 4294901760
    %v108 = vsub.f32 %v50, %v107
    %v109 = vand.u32 %v108, 4294901760
    %v110 = vsub.f32 %v108, %v109
    %v111 = vand.u32 %v110, 4294901760
    %112 = vmatmul.f32.gmra.mxu0 %v111
    %v113 = vpop.f32.mrf.mxu0
    %v114 = vadd.f32 0.0, %v113
    %115 = vdwg.mxu0
    %v116 = vand.u32 %v66, 4294901760
    %v117 = vsub.f32 %v66, %v116
    %v118 = vand.u32 %v117, 4294901760
    %v119 = vsub.f32 %v117, %v118
    %v120 = vand.u32 %v119, 4294901760
    %121 = vmatpush.msra.mxu0 %v120
    %v122 = vand.u32 %v65, 4294901760
    %v123 = vsub.f32 %v65, %v122
    %v124 = vand.u32 %v123, 4294901760
    %v125 = vsub.f32 %v123, %v124
    %v126 = vand.u32 %v125, 4294901760
    %127 = vmatpush.msra.mxu0 %v126
    %v128 = vand.u32 %v64, 4294901760
    %v129 = vsub.f32 %v64, %v128
    %v130 = vand.u32 %v129, 4294901760
    %v131 = vsub.f32 %v129, %v130
    %v132 = vand.u32 %v131, 4294901760
    %133 = vmatpush.msra.mxu0 %v132
    %v134 = vand.u32 %v63, 4294901760
    %v135 = vsub.f32 %v63, %v134
    %v136 = vand.u32 %v135, 4294901760
    %v137 = vsub.f32 %v135, %v136
    %v138 = vand.u32 %v137, 4294901760
    %139 = vmatpush.msra.mxu0 %v138
    %v140 = vand.u32 %v62, 4294901760
    %v141 = vsub.f32 %v62, %v140
    %v142 = vand.u32 %v141, 4294901760
    %v143 = vsub.f32 %v141, %v142
    %v144 = vand.u32 %v143, 4294901760
    %145 = vmatpush.msra.mxu0 %v144
    %v146 = vand.u32 %v61, 4294901760
    %v147 = vsub.f32 %v61, %v146
    %v148 = vand.u32 %v147, 4294901760
    %v149 = vsub.f32 %v147, %v148
    %v150 = vand.u32 %v149, 4294901760
    %151 = vmatpush.msra.mxu0 %v150
    %v152 = vand.u32 %v60, 4294901760
    %v153 = vsub.f32 %v60, %v152
    %v154 = vand.u32 %v153, 4294901760
    %v155 = vsub.f32 %v153, %v154
    %v156 = vand.u32 %v155, 4294901760
    %157 = vmatpush.msra.mxu0 %v156
    %v158 = vand.u32 %v59, 4294901760
    %v159 = vsub.f32 %v59, %v158
    %v160 = vand.u32 %v159, 4294901760
    %v161 = vsub.f32 %v159, %v160
    %v162 = vand.u32 %v161, 4294901760
    %163 = vmatpush.msra.mxu0 %v162
    %v164 = vand.u32 %v58, 4294901760
    %v165 = vsub.f32 %v58, %v164
    %v166 = vand.u32 %v165, 4294901760
    %v167 = vsub.f32 %v165, %v166
    %v168 = vand.u32 %v167, 4294901760
    %169 = vmatpush.msra.mxu0 %v168
    %v170 = vand.u32 %v57, 4294901760
    %v171 = vsub.f32 %v57, %v170
    %v172 = vand.u32 %v171, 4294901760
    %v173 = vsub.f32 %v171, %v172
    %v174 = vand.u32 %v173, 4294901760
    %175 = vmatpush.msra.mxu0 %v174
    %v176 = vand.u32 %v56, 4294901760
    %v177 = vsub.f32 %v56, %v176
    %v178 = vand.u32 %v177, 4294901760
    %v179 = vsub.f32 %v177, %v178
    %v180 = vand.u32 %v179, 4294901760
    %181 = vmatpush.msra.mxu0 %v180
    %v182 = vand.u32 %v55, 4294901760
    %v183 = vsub.f32 %v55, %v182
    %v184 = vand.u32 %v183, 4294901760
    %v185 = vsub.f32 %v183, %v184
    %v186 = vand.u32 %v185, 4294901760
    %187 = vmatpush.msra.mxu0 %v186
    %v188 = vand.u32 %v54, 4294901760
    %v189 = vsub.f32 %v54, %v188
    %v190 = vand.u32 %v189, 4294901760
    %v191 = vsub.f32 %v189, %v190
    %v192 = vand.u32 %v191, 4294901760
    %193 = vmatpush.msra.mxu0 %v192
    %v194 = vand.u32 %v53, 4294901760
    %v195 = vsub.f32 %v53, %v194
    %v196 = vand.u32 %v195, 4294901760
    %v197 = vsub.f32 %v195, %v196
    %v198 = vand.u32 %v197, 4294901760
    %199 = vmatpush.msra.mxu0 %v198
    %v200 = vand.u32 %v52, 4294901760
    %v201 = vsub.f32 %v52, %v200
    %v202 = vand.u32 %v201, 4294901760
    %v203 = vsub.f32 %v201, %v202
    %v204 = vand.u32 %v203, 4294901760
    %205 = vmatpush.msra.mxu0 %v204
    %v206 = vand.u32 %v51, 4294901760
    %v207 = vsub.f32 %v51, %v206
    %v208 = vand.u32 %v207, 4294901760
    %v209 = vsub.f32 %v207, %v208
    %v210 = vand.u32 %v209, 4294901760
    %211 = vmatpush.msra.mxu0 %v210
    %v212 = vand.u32 %v49, 4294901760
    %213 = vmatmul.f32.gmra.mxu0 %v212
    %v214 = vpop.f32.mrf.mxu0
    %v215 = vadd.f32 %v106, %v214
    %v216 = vand.u32 %v50, 4294901760
    %217 = vmatmul.f32.gmra.mxu0 %v216
    %v218 = vpop.f32.mrf.mxu0
    %v219 = vadd.f32 %v114, %v218
    %220 = vdwg.mxu0
    %v221 = vand.u32 %v66, 4294901760
    %v222 = vsub.f32 %v66, %v221
    %223 = vmatpush.msra.mxu0 %v222
    %v224 = vand.u32 %v65, 4294901760
    %v225 = vsub.f32 %v65, %v224
    %226 = vmatpush.msra.mxu0 %v225
    %v227 = vand.u32 %v64, 4294901760
    %v228 = vsub.f32 %v64, %v227
    %229 = vmatpush.msra.mxu0 %v228
    %v230 = vand.u32 %v63, 4294901760
    %v231 = vsub.f32 %v63, %v230
    %232 = vmatpush.msra.mxu0 %v231
    %v233 = vand.u32 %v62, 4294901760
    %v234 = vsub.f32 %v62, %v233
    %235 = vmatpush.msra.mxu0 %v234
    %v236 = vand.u32 %v61, 4294901760
    %v237 = vsub.f32 %v61, %v236
    %238 = vmatpush.msra.mxu0 %v237
    %v239 = vand.u32 %v60, 4294901760
    %v240 = vsub.f32 %v60, %v239
    %241 = vmatpush.msra.mxu0 %v240
    %v242 = vand.u32 %v59, 4294901760
    %v243 = vsub.f32 %v59, %v242
    %244 = vmatpush.msra.mxu0 %v243
    %v245 = vand.u32 %v58, 4294901760
    %v246 = vsub.f32 %v58, %v245
    %247 = vmatpush.msra.mxu0 %v246
    %v248 = vand.u32 %v57, 4294901760
    %v249 = vsub.f32 %v57, %v248
    %250 = vmatpush.msra.mxu0 %v249
    %v251 = vand.u32 %v56, 4294901760
    %v252 = vsub.f32 %v56, %v251
    %253 = vmatpush.msra.mxu0 %v252
    %v254 = vand.u32 %v55, 4294901760
    %v255 = vsub.f32 %v55, %v254
    %256 = vmatpush.msra.mxu0 %v255
    %v257 = vand.u32 %v54, 4294901760
    %v258 = vsub.f32 %v54, %v257
    %259 = vmatpush.msra.mxu0 %v258
    %v260 = vand.u32 %v53, 4294901760
    %v261 = vsub.f32 %v53, %v260
    %262 = vmatpush.msra.mxu0 %v261
    %v263 = vand.u32 %v52, 4294901760
    %v264 = vsub.f32 %v52, %v263
    %265 = vmatpush.msra.mxu0 %v264
    %v266 = vand.u32 %v51, 4294901760
    %v267 = vsub.f32 %v51, %v266
    %268 = vmatpush.msra.mxu0 %v267
    %v269 = vand.u32 %v49, 4294901760
    %v270 = vsub.f32 %v49, %v269
    %271 = vmatmul.f32.gmra.mxu0 %v270
    %v272 = vpop.f32.mrf.mxu0
    %v273 = vadd.f32 %v215, %v272
    %v274 = vand.u32 %v50, 4294901760
    %v275 = vsub.f32 %v50, %v274
    %276 = vmatmul.f32.gmra.mxu0 %v275
    %v277 = vpop.f32.mrf.mxu0
    %v278 = vadd.f32 %v219, %v277
    %279 = vdwg.mxu0
    %v280 = vand.u32 %v66, 4294901760
    %281 = vmatpush.msra.mxu0 %v280
    %v282 = vand.u32 %v65, 4294901760
    %283 = vmatpush.msra.mxu0 %v282
    %v284 = vand.u32 %v64, 4294901760
    %285 = vmatpush.msra.mxu0 %v284
    %v286 = vand.u32 %v63, 4294901760
    %287 = vmatpush.msra.mxu0 %v286
    %v288 = vand.u32 %v62, 4294901760
    %289 = vmatpush.msra.mxu0 %v288
    %v290 = vand.u32 %v61, 4294901760
    %291 = vmatpush.msra.mxu0 %v290
    %v292 = vand.u32 %v60, 4294901760
    %293 = vmatpush.msra.mxu0 %v292
    %v294 = vand.u32 %v59, 4294901760
    %295 = vmatpush.msra.mxu0 %v294
    %v296 = vand.u32 %v58, 4294901760
    %297 = vmatpush.msra.mxu0 %v296
    %v298 = vand.u32 %v57, 4294901760
    %299 = vmatpush.msra.mxu0 %v298
    %v300 = vand.u32 %v56, 4294901760
    %301 = vmatpush.msra.mxu0 %v300
    %v302 = vand.u32 %v55, 4294901760
    %303 = vmatpush.msra.mxu0 %v302
    %v304 = vand.u32 %v54, 4294901760
    %305 = vmatpush.msra.mxu0 %v304
    %v306 = vand.u32 %v53, 4294901760
    %307 = vmatpush.msra.mxu0 %v306
    %v308 = vand.u32 %v52, 4294901760
    %309 = vmatpush.msra.mxu0 %v308
    %v310 = vand.u32 %v51, 4294901760
    %311 = vmatpush.msra.mxu0 %v310
    %v312 = vand.u32 %v49, 4294901760
    %v313 = vsub.f32 %v49, %v312
    %v314 = vand.u32 %v313, 4294901760
    %315 = vmatmul.f32.gmra.mxu0 %v314
    %v316 = vpop.f32.mrf.mxu0
    %v317 = vadd.f32 %v273, %v316
    %v318 = vand.u32 %v50, 4294901760
    %v319 = vsub.f32 %v50, %v318
    %v320 = vand.u32 %v319, 4294901760
    %321 = vmatmul.f32.gmra.mxu0 %v320
    %v322 = vpop.f32.mrf.mxu0
    %v323 = vadd.f32 %v278, %v322
    %324 = vdwg.mxu0
    %v325 = vand.u32 %v66, 4294901760
    %v326 = vsub.f32 %v66, %v325
    %v327 = vand.u32 %v326, 4294901760
    %328 = vmatpush.msra.mxu0 %v327
    %v329 = vand.u32 %v65, 4294901760
    %v330 = vsub.f32 %v65, %v329
    %v331 = vand.u32 %v330, 4294901760
    %332 = vmatpush.msra.mxu0 %v331
    %v333 = vand.u32 %v64, 4294901760
    %v334 = vsub.f32 %v64, %v333
    %v335 = vand.u32 %v334, 4294901760
    %336 = vmatpush.msra.mxu0 %v335
    %v337 = vand.u32 %v63, 4294901760
    %v338 = vsub.f32 %v63, %v337
    %v339 = vand.u32 %v338, 4294901760
    %340 = vmatpush.msra.mxu0 %v339
    %v341 = vand.u32 %v62, 4294901760
    %v342 = vsub.f32 %v62, %v341
    %v343 = vand.u32 %v342, 4294901760
    %344 = vmatpush.msra.mxu0 %v343
    %v345 = vand.u32 %v61, 4294901760
    %v346 = vsub.f32 %v61, %v345
    %v347 = vand.u32 %v346, 4294901760
    %348 = vmatpush.msra.mxu0 %v347
    %v349 = vand.u32 %v60, 4294901760
    %v350 = vsub.f32 %v60, %v349
    %v351 = vand.u32 %v350, 4294901760
    %352 = vmatpush.msra.mxu0 %v351
    %v353 = vand.u32 %v59, 4294901760
    %v354 = vsub.f32 %v59, %v353
    %v355 = vand.u32 %v354, 4294901760
    %356 = vmatpush.msra.mxu0 %v355
    %v357 = vand.u32 %v58, 4294901760
    %v358 = vsub.f32 %v58, %v357
    %v359 = vand.u32 %v358, 4294901760
    %360 = vmatpush.msra.mxu0 %v359
    %v361 = vand.u32 %v57, 4294901760
    %v362 = vsub.f32 %v57, %v361
    %v363 = vand.u32 %v362, 4294901760
    %364 = vmatpush.msra.mxu0 %v363
    %v365 = vand.u32 %v56, 4294901760
    %v366 = vsub.f32 %v56, %v365
    %v367 = vand.u32 %v366, 4294901760
    %368 = vmatpush.msra.mxu0 %v367
    %v369 = vand.u32 %v55, 4294901760
    %v370 = vsub.f32 %v55, %v369
    %v371 = vand.u32 %v370, 4294901760
    %372 = vmatpush.msra.mxu0 %v371
    %v373 = vand.u32 %v54, 4294901760
    %v374 = vsub.f32 %v54, %v373
    %v375 = vand.u32 %v374, 4294901760
    %376 = vmatpush.msra.mxu0 %v375
    %v377 = vand.u32 %v53, 4294901760
    %v378 = vsub.f32 %v53, %v377
    %v379 = vand.u32 %v378, 4294901760
    %380 = vmatpush.msra.mxu0 %v379
    %v381 = vand.u32 %v52, 4294901760
    %v382 = vsub.f32 %v52, %v381
    %v383 = vand.u32 %v382, 4294901760
    %384 = vmatpush.msra.mxu0 %v383
    %v385 = vand.u32 %v51, 4294901760
    %v386 = vsub.f32 %v51, %v385
    %v387 = vand.u32 %v386, 4294901760
    %388 = vmatpush.msra.mxu0 %v387
    %v389 = vand.u32 %v49, 4294901760
    %390 = vmatmul.f32.gmra.mxu0 %v389
    %v391 = vpop.f32.mrf.mxu0
    %v392 = vadd.f32 %v317, %v391
    %v393 = vand.u32 %v50, 4294901760
    %394 = vmatmul.f32.gmra.mxu0 %v393
    %v395 = vpop.f32.mrf.mxu0
    %v396 = vadd.f32 %v323, %v395
    %397 = vdwg.mxu0
    %v398 = vand.u32 %v66, 4294901760
    %399 = vmatpush.msra.mxu0 %v398
    %v400 = vand.u32 %v65, 4294901760
    %401 = vmatpush.msra.mxu0 %v400
    %v402 = vand.u32 %v64, 4294901760
    %403 = vmatpush.msra.mxu0 %v402
    %v404 = vand.u32 %v63, 4294901760
    %405 = vmatpush.msra.mxu0 %v404
    %v406 = vand.u32 %v62, 4294901760
    %407 = vmatpush.msra.mxu0 %v406
    %v408 = vand.u32 %v61, 4294901760
    %409 = vmatpush.msra.mxu0 %v408
    %v410 = vand.u32 %v60, 4294901760
    %411 = vmatpush.msra.mxu0 %v410
    %v412 = vand.u32 %v59, 4294901760
    %413 = vmatpush.msra.mxu0 %v412
    %v414 = vand.u32 %v58, 4294901760
    %415 = vmatpush.msra.mxu0 %v414
    %v416 = vand.u32 %v57, 4294901760
    %417 = vmatpush.msra.mxu0 %v416
    %v418 = vand.u32 %v56, 4294901760
    %419 = vmatpush.msra.mxu0 %v418
    %v420 = vand.u32 %v55, 4294901760
    %421 = vmatpush.msra.mxu0 %v420
    %v422 = vand.u32 %v54, 4294901760
    %423 = vmatpush.msra.mxu0 %v422
    %v424 = vand.u32 %v53, 4294901760
    %425 = vmatpush.msra.mxu0 %v424
    %v426 = vand.u32 %v52, 4294901760
    %427 = vmatpush.msra.mxu0 %v426
    %v428 = vand.u32 %v51, 4294901760
    %429 = vmatpush.msra.mxu0 %v428
    %v430 = vand.u32 %v49, 4294901760
    %431 = vmatmul.f32.gmra.mxu0 %v430
    %v432 = vpop.f32.mrf.mxu0
    %v433 = vadd.f32 %v392, %v432
    %v434 = vand.u32 %v50, 4294901760
    %435 = vmatmul.f32.gmra.mxu0 %v434
    %v436 = vpop.f32.mrf.mxu0
    %v437 = vadd.f32 %v396, %v436
    %438 = vdwg.mxu0
    %439 = vst [vmem:[#allocation5] sm:$0xff] %v433
    %440 = vst [vmem:[#allocation5 + $0x8] sm:$0xff] %v437
    %441 = vmax.xlane.f32.xlu0 %v433
    %v442 = vpop.xlane.xlu0 %441
    %443 = vmax.xlane.f32.xlu0 %v437
    %v444 = vpop.xlane.xlu0 %443
    %v445 = vsub.f32 %v433, %v442
    %v446 = vsub.f32 %v437, %v444
    %v447 = vmul.f32 %v445, 1.442695
    %v448 = vpow.pop %v447
    %v449 = vmul.f32 %v446, 1.442695
    %v450 = vpow.pop %v449
    %451 = vadd.xlane.f32.xlu0 %v448
    %v452 = vpop.xlane.xlu0 %451
    %453 = vadd.xlane.f32.xlu0 %v450
    %v454 = vpop.xlane.xlu0 %453
    %v455 = vlog2.pop %v452
    %v456 = vmul.f32 %v455, 0.6931472
    %v457 = vlog2.pop %v454
    %v458 = vmul.f32 %v457, 0.6931472
    %v459 = vadd.f32 %v456, %v442
    %v460 = vadd.f32 %v458, %v444
    %v461 = vld [vmem:[%s1] sm:$0xff]
    %v462 = vld [vmem:[%s1 + $0x8] sm:$0xff]
    %463 = vset.pattern.permute.xlu0 0
    %464 = vperm.xlu0 %463, %v461
    %v465 = vpop.permute.xlu0 %464
    %466 = vset.pattern.permute.xlu0 0
    %467 = vperm.xlu0 %466, %v462
    %v468 = vpop.permute.xlu0 %467
    %vm469 = vcmp.eq.s32.totalorder %v38, %v465
    %vm470 = vcmp.eq.s32.totalorder %v38, %v468
    %v471 = vsel %vm469, %v433, 0.0
    %v472 = vsel %vm470, %v437, 0.0
    %473 = vadd.xlane.f32.xlu0 %v471
    %v474 = vpop.xlane.xlu0 %473
    %475 = vadd.xlane.f32.xlu0 %v472
    %v476 = vpop.xlane.xlu0 %475
    %vm477 = vcmp.ge.s32.totalorder %v461, 0
    %vm478 = vcmp.ge.s32.totalorder %v462, 0
    %v479 = vsel %vm477, 1, 0
    %v480 = vsel %vm478, 1, 0
    %v481 = vcvt.s32.f32 %v479
    %v482 = vcvt.s32.f32 %v480
    %v483 = vsub.f32 %v459, %v474
    %v484 = vsub.f32 %v460, %v476
    %v485 = vmul.f32 %v481, %v483
    %v486 = vmul.f32 %v482, %v484
    %vm487 = vcmask 7168
    %v488 = vsel %vm487, %v485, 0.0
    %v489 = vsel %vm487, %v486, 0.0
    %v490 = vadd.f32 %v488, %v489
    %v491 = vrot.slane %v490, 4
    %v492 = vadd.f32 %v490, %v491
    %v493 = vrot.slane %v492, 2
    %v494 = vadd.f32 %v492, %v493
    %v495 = vrot.slane %v494, 1
    %v496 = vadd.f32 %v494, %v495
    %vm497 = vcmask 0
    %498 = vst.msk [vmem:[#allocation6] sm:$0x1] %vm497, %v496
    %v499 = vsel %vm487, %v481, 0.0
    %v500 = vsel %vm487, %v482, 0.0
    %v501 = vadd.f32 %v499, %v500
    %v502 = vrot.slane %v501, 4
    %v503 = vadd.f32 %v501, %v502
    %v504 = vrot.slane %v503, 2
    %v505 = vadd.f32 %v503, %v504
    %v506 = vrot.slane %v505, 1
    %v507 = vadd.f32 %v505, %v506
    %508 = vst.msk [vmem:[#allocation8] sm:$0x1] %vm497, %v507
    // Predicated region
    $region18: #{tpu_custom_call.1} parent=1 // pred_check
      _
    $region19: #{tpu_custom_call.1} parent=1 // pred_check_branch
      %510 = sbr.rel (0) target = $region21
    $region20: #{tpu_custom_call.1} parent=1 // pred_region
      %512 = vsyncadd [#allocation4], 0
      %s513 = sshll.u32 [#allocation5], 4
      %s514 = int_to_ptr.vmem [resolvable:$true] %s513
      %s515 = sshll.u32 %s3, 4
      %s516 = int_to_ptr.hbm [resolvable:$true] %s515
      %521 = dma.vmem_to_hbm [thread:$0]  %s514, 256, %s516, [#allocation4], 128, 128, 8
    $region21: #{tpu_custom_call.1} parent=1 // pred_fallthru
      _
    // Predicated region
    $region22: #{tpu_custom_call.1} parent=1 // pred_check
      _
    $region23: #{tpu_custom_call.1} parent=1 // pred_check_branch
      %523 = sbr.rel (0) target = $region25
    $region24: #{tpu_custom_call.1} parent=1 // pred_region
      %525 = vsyncadd [#allocation7], 0
      %s527 = sshll.u32 [#allocation6], 4
      %s528 = int_to_ptr.vmem [resolvable:$true] %s527
      %s529 = sshll.u32 %s4, 4
      %s530 = int_to_ptr.hbm [resolvable:$true] %s529
      %532 = dma.vmem_to_hbm [thread:$0]  %s528, 16, %s530, [#allocation7]
    $region25: #{tpu_custom_call.1} parent=1 // pred_fallthru
      _
    // Predicated region
    $region26: #{tpu_custom_call.1} parent=1 // pred_check
      _
    $region27: #{tpu_custom_call.1} parent=1 // pred_check_branch
      %534 = sbr.rel (0) target = $region29
    $region28: #{tpu_custom_call.1} parent=1 // pred_region
      %536 = vsyncadd [#allocation7], 0
      %s538 = sshll.u32 [#allocation8], 4
      %s539 = int_to_ptr.vmem [resolvable:$true] %s538
      %s540 = sshll.u32 %s5, 4
      %s541 = int_to_ptr.hbm [resolvable:$true] %s540
      %543 = dma.vmem_to_hbm [thread:$0]  %s539, 16, %s541, [#allocation7]
    $region29: #{tpu_custom_call.1} parent=1 // pred_fallthru
      _
    // Predicated region
    $region30: #{tpu_custom_call.1} parent=1 // pred_check
      _
    $region31: #{tpu_custom_call.1} parent=1 // pred_check_branch
      %545 = sbr.rel (0) target = $region33
    $region32: #{tpu_custom_call.1} parent=1 // pred_region
      %547 = dma.done [#allocation4], 256
    $region33: #{tpu_custom_call.1} parent=1 // pred_fallthru
      _
    // Predicated region
    $region34: #{tpu_custom_call.1} parent=1 // pred_check
      _
    $region35: #{tpu_custom_call.1} parent=1 // pred_check_branch
      %549 = sbr.rel (0) target = $region37
    $region36: #{tpu_custom_call.1} parent=1 // pred_region
      %551 = dma.done [#allocation7], 16
    $region37: #{tpu_custom_call.1} parent=1 // pred_fallthru
      _
    // Predicated region
    $region38: #{tpu_custom_call.1} parent=1 // pred_check
      _
    $region39: #{tpu_custom_call.1} parent=1 // pred_check_branch
      %553 = sbr.rel (0) target = $region41
    $region40: #{tpu_custom_call.1} parent=1 // pred_region
      %555 = dma.done [#allocation7], 16
    $region41: #{tpu_custom_call.1} parent=1 // pred_fallthru
      _
    %556 = vsyncpa [#allocation3], 1
    %557 = vsyncpa [#allocation4], 1
    %558 = vsyncpa [#allocation7], 1

</llo_original>
